<compile_context>
chip_gen: v5e
topology: v5e:2x2
jax: 0.10.0
libtpu: 0.0.40
codegen_flags: <defaults>
</compile_context>

<pallas_src>
import jax
import jax.numpy as jnp
from jax.experimental import pallas as pl
from jax.experimental.pallas import tpu as pltpu


_LANES = 128


# ---------------------------------------------------------------------------
# Hardware / tiling helpers
# ---------------------------------------------------------------------------
def _round_up(a: int, b: int) -> int:
    return (a + b - 1) // b * b


def _sublane_tile(dtype) -> int:
    # Minimum sublane packing for the dtype: 8 (f32), 16 (bf16/f16), 32 (int8).
    return max(8, 32 // jnp.dtype(dtype).itemsize)


def _vmem_capacity_bytes() -> int:
    try:
        info = pltpu.get_tpu_info()
        cap = int(getattr(info, "vmem_capacity_bytes", 0) or 0)
        if cap > 0:
            return cap
    except Exception:
        pass
    try:
        kind = jax.devices()[0].device_kind.lower()
    except Exception:
        kind = ""
    if "v5" in kind or "v6" in kind:
        return 128 * 1024 * 1024
    return 64 * 1024 * 1024            # conservative default (v7x: 64 MiB / TC)


def _plan_spatial(bytes_per_lane: int, hw: int, budget: int, fb_mult: int):
    """Return (hw_padded, spatial_tile)."""
    if hw % _LANES != 0:
        # Full-extent single tile if it (plus in-kernel f32 temps) fits VMEM,
        # otherwise zero-pad HW to a lane multiple in the wrapper (rare path).
        if hw * bytes_per_lane * fb_mult <= budget:
            return hw, hw
        hw_pad = _round_up(hw, _LANES)
    else:
        hw_pad = hw
    max_lanes = max(_LANES, (budget // max(1, bytes_per_lane)) // _LANES * _LANES)
    m = hw_pad // _LANES
    best = _LANES
    for d in range(1, m + 1):
        if m % d == 0 and d * _LANES <= max_lanes:
            best = d * _LANES
    return hw_pad, best


def _plan_lane_chunk(thw: int, rows_f32: int):
    """Lane-chunk the in-kernel f32 math so intermediates stay ~vreg-resident."""
    if thw % _LANES != 0:
        return thw, 1
    vreg_budget = 48 * 4096                     # ~48 of the 64 vregs
    for c in (512, 384, 256, 128):
        if thw % c == 0 and rows_f32 * c * 4 <= vreg_budget:
            return c, thw // c
    return _LANES, thw // _LANES


def _pick_row_tile(rows: int, max_rows: int) -> int:
    """Sublane-legal (multiple of 8 or full) row tile, >=2 tiles when possible."""
    if rows % 8 == 0 and rows > 8:
        best, t = 8, 8
        limit = min(rows // 2, max_rows)
        while t <= limit:
            if rows % t == 0:
                best = t
            t += 8
        return best
    return rows


def _pick_batch_tile(batch: int, max_batch: int) -> int:
    """Batch tile for the (tb, C) output block: multiple of 8 or full batch."""
    best, t = batch, 8
    limit = min(batch // 2, max_batch)
    while t <= limit:
        if batch % t == 0:
            best = t
        t += 8
    return best


# ---------------------------------------------------------------------------
# Kernels
# ---------------------------------------------------------------------------
def _rowsum_kernel_factory(chunk: int, n_chunks: int):
    """Streams (tr, thw) tiles; accumulates per-row spatial sums into (tr, 1)."""

    def kernel(x_ref, o_ref):
        @pl.when(pl.program_id(1) == 0)
        def _init():
            o_ref[...] = jnp.zeros_like(o_ref)

        if n_chunks == 1:
            o_ref[...] += jnp.sum(x_ref[...].astype(jnp.float32), axis=-1,
                                  keepdims=True)
        else:
            def body(c, carry):
                off = pl.multiple_of(c * chunk, chunk)
                xc = x_ref[:, pl.ds(off, chunk)].astype(jnp.float32)
                o_ref[...] += jnp.sum(xc, axis=-1, keepdims=True)
                return carry
            jax.lax.fori_loop(0, n_chunks, body, 0, unroll=n_chunks <= 8)

    return kernel


def _softmax_sum_kernel_factory(chunk: int, n_chunks: int):
    """Streams (tb, C, thw) tiles; accumulates sum_HW softmax_C(x) into (tb, C)."""

    def _recip(s):
        # EUP approx reciprocal + one Newton step (~f32 accurate, no full divide).
        r = pl.reciprocal(s, approx=True)
        return r * (2.0 - s * r)

    def _chunk_sum(xc):
        m = jnp.max(xc, axis=1, keepdims=True)          # (tb, 1, chunk)
        e = jnp.exp(xc - m)
        s = jnp.sum(e, axis=1, keepdims=True)           # (tb, 1, chunk)
        return jnp.sum(e * _recip(s), axis=-1)          # (tb, C)

    def kernel(x_ref, o_ref):
        @pl.when(pl.program_id(1) == 0)
        def _init():
            o_ref[...] = jnp.zeros_like(o_ref)

        if n_chunks == 1:
            o_ref[...] += _chunk_sum(x_ref[...].astype(jnp.float32))
        else:
            def body(c, carry):
                off = pl.multiple_of(c * chunk, chunk)
                xc = x_ref[:, :, pl.ds(off, chunk)].astype(jnp.float32)
                o_ref[...] += _chunk_sum(xc)
                return carry
            jax.lax.fori_loop(0, n_chunks, body, 0, unroll=n_chunks <= 8)

    return kernel


# ---------------------------------------------------------------------------
# Pallas driver: spatial sums over H*W
# ---------------------------------------------------------------------------
def _spatial_sums(x, order: int, spatial_tile=None):
    """Returns (sums[B, C] float32, number_of_zero_padded_spatial_columns)."""
    B, C, H, W = x.shape
    HW = H * W
    itemsize = jnp.dtype(x.dtype).itemsize
    sub = _sublane_tile(x.dtype)

    vmem_limit = min(_vmem_capacity_bytes() // 2, 64 * 1024 * 1024)
    tile_budget = vmem_limit // 4        # double-buffered x stream uses <= limit/2

    params = pltpu.CompilerParams(
        dimension_semantics=("parallel", "arbitrary"),
        vmem_limit_bytes=vmem_limit,
    )

    if order == 1:
        # ------- avg_softmax: dense 2-D (B*C, HW) row-sum stream -------------
        R = B * C
        xr = x.reshape(R, HW)
        max_rows = max(8, tile_budget // (_LANES * itemsize))
        tr = _pick_row_tile(R, max_rows)
        bytes_per_lane = _round_up(tr, sub) * itemsize
        fb_mult = 1 + max(1, 4 // itemsize)              # + f32 cast temp
        hw_pad, thw = _plan_spatial(bytes_per_lane, HW, tile_budget, fb_mult)
        if spatial_tile is not None:
            assert HW % spatial_tile == 0
            hw_pad, thw = HW, spatial_tile
        if hw_pad != HW:
            xr = jnp.pad(xr, ((0, 0), (0, hw_pad - HW)))
        chunk, n_chunks = _plan_lane_chunk(thw, _round_up(tr, 8))

        sums = pl.pallas_call(
            _rowsum_kernel_factory(chunk, n_chunks),
            out_shape=jax.ShapeDtypeStruct((R, 1), jnp.float32),
            grid=(R // tr, hw_pad // thw),
            in_specs=[pl.BlockSpec((tr, thw), lambda i, k: (i, k))],
            out_specs=pl.BlockSpec((tr, 1), lambda i, k: (i, 0)),
            compiler_params=params,
        )(xr)
        return sums.reshape(B, C), hw_pad - HW

    # ----------- softmax_avg: (B, C, HW) channel-softmax stream --------------
    xf = x.reshape(B, C, HW)
    c_pad = _round_up(C, sub)
    max_b = max(1, tile_budget // (c_pad * _LANES * itemsize))
    tb = _pick_batch_tile(B, max_b)
    bytes_per_lane = tb * c_pad * itemsize
    fb_mult = 1 + 3 * max(1, 4 // itemsize)              # + f32 softmax temps
    hw_pad, thw = _plan_spatial(bytes_per_lane, HW, tile_budget, fb_mult)
    if spatial_tile is not None:
        assert HW % spatial_tile == 0
        hw_pad, thw = HW, spatial_tile
    if hw_pad != HW:
        xf = jnp.pad(xf, ((0, 0), (0, 0), (0, hw_pad - HW)))
    chunk, n_chunks = _plan_lane_chunk(thw, tb * _round_up(C, 8))

    sums = pl.pallas_call(
        _softmax_sum_kernel_factory(chunk, n_chunks),
        out_shape=jax.ShapeDtypeStruct((B, C), jnp.float32),
        grid=(B // tb, hw_pad // thw),
        in_specs=[pl.BlockSpec((tb, C, thw), lambda i, k: (i, 0, k))],
        out_specs=pl.BlockSpec((tb, C), lambda i, k: (i, 0)),
        compiler_params=params,
    )(xf)
    return sums, hw_pad - HW


# ---------------------------------------------------------------------------
# Wrapper (JAX/Pallas equivalent of CSSRCriterion.forward)
# ---------------------------------------------------------------------------
def cssr_criterion(x, y=None, *, avg_order="avg_softmax", prob=False, pred=False,
                   spatial_tile=None):
    """x: (B, C, H, W) array (any float dtype, streamed natively); y: (B,) ints."""
    order = {"avg_softmax": 1, "softmax_avg": 2}[avg_order]
    B, C, H, W = x.shape
    HW = H * W

    sums, n_pad = _spatial_sums(x, order, spatial_tile=spatial_tile)  # (B, C) f32

    if order == 1:
        g = jax.nn.softmax(sums / HW, axis=1)       # zero padding drops out of sum
    else:
        # each zero-padded column contributes exactly 1/C to every channel
        g = (sums - float(n_pad) / C) / HW

    if prob:
        return g
    if pred:
        return jnp.argmax(g, axis=1)
    y = jnp.reshape(y, (-1,)).astype(jnp.int32)
    tgt = jnp.take_along_axis(g, y[:, None], axis=1)[:, 0]
    # TODO(synk): out-of-range labels silently give tgt=0 -> inf loss (torch scatter_ would error).
    return jnp.mean(-jnp.log(tgt))


# ---------------------------------------------------------------------------
# Pure-JAX reference mirroring the PyTorch module
# ---------------------------------------------------------------------------
def _reference(x, y, avg_order):
    xf = x.astype(jnp.float32)
    if avg_order == "avg_softmax":
        g = jax.nn.softmax(jnp.mean(xf, axis=(2, 3)), axis=1)
    else:
        g = jnp.mean(jax.nn.softmax(xf, axis=1), axis=(2, 3))
    tgt = jnp.take_along_axis(g, y[:, None], axis=1)[:, 0]
    return g, jnp.mean(-jnp.log(tgt))


if __name__ == "__main__":
    key = jax.random.PRNGKey(0)

    # (B, C, H, W, dtype, forced spatial tile)
    configs = [
        (2, 4, 16, 16, jnp.float32, None),    # module-spec shape, single block
        (16, 8, 16, 16, jnp.bfloat16, 128),   # bf16 stream + 2-step spatial reduction
        (16, 10, 8, 8, jnp.float32, None),    # HW not a multiple of 128 (full-extent tile)
        (4, 6, 32, 32, jnp.float32, None),    # exercises the in-kernel lane-chunk loop
    ]

    for (B, C, H, W, dt, st) in configs:
        key, kx, ky = jax.random.split(key, 3)
        x = jax.random.normal(kx, (B, C, H, W), dtype=jnp.float32).astype(dt)
        y = jax.random.randint(ky, (B,), 0, C, dtype=jnp.int32)

        for order in ("avg_softmax", "softmax_avg"):
            loss = cssr_criterion(x, y, avg_order=order, spatial_tile=st)
            g = cssr_criterion(x, avg_order=order, prob=True, spatial_tile=st)
            p = cssr_criterion(x, avg_order=order, pred=True, spatial_tile=st)
            jax.block_until_ready((loss, g, p))

            g_ref, loss_ref = _reference(x, y, order)
            assert jnp.allclose(g, g_ref, atol=1e-5, rtol=1e-5), (order, (B, C, H, W))
            assert jnp.allclose(loss, loss_ref, atol=1e-5, rtol=1e-5), (order, (B, C, H, W))
            assert jnp.array_equal(p, jnp.argmax(g_ref, axis=1)), (order, (B, C, H, W))

    print("KERNEL_OK")
</pallas_src>

<mosaic_0001>
module attributes {stable_mosaic.version = 11 : i64} {
  func.func @kernel(%arg0: i32, %arg1: i32, %arg2: memref<8x256xf32, #tpu.memory_space<vmem>>, %arg3: memref<8x1xf32, #tpu.memory_space<vmem>>) attributes {dimension_semantics = [#tpu.dimension_semantics<parallel>, #tpu.dimension_semantics<arbitrary>], iteration_bounds = array<i64: 1, 1>, scalar_prefetch = 0 : i64, scratch_operands = 0 : i64, tpu.core_type = #tpu.core_type<tc>, window_params = [{transform_indices = @transform_0, window_bounds = array<i64: 8, 256>}, {transform_indices = @transform_1, window_bounds = array<i64: 8, 1>}]} {
    %c0_i32 = arith.constant 0 : i32
    %0 = arith.cmpi eq, %arg1, %c0_i32 : i32
    %1 = arith.extui %0 : i1 to i32
    %c0_i32_0 = arith.constant 0 : i32
    %2 = arith.cmpi ne, %1, %c0_i32_0 : i32
    scf.if %2 {
      %cst_6 = arith.constant 0.000000e+00 : f32
      %9 = vector.broadcast %cst_6 : f32 to vector<8x1xf32>
      %c0_7 = arith.constant 0 : index
      %c0_8 = arith.constant 0 : index
      %10 = vector.load %arg3[%c0_7, %c0_8] : memref<8x1xf32, #tpu.memory_space<vmem>>, vector<8x1xf32>
      tpu.vector_store %arg3[%c0_7, %c0_8], %9 {strides = array<i32>} : memref<8x1xf32, #tpu.memory_space<vmem>>, vector<8x1xf32>,
    } else {
    }
    %c0 = arith.constant 0 : index
    %c0_1 = arith.constant 0 : index
    %3 = vector.load %arg3[%c0, %c0_1] : memref<8x1xf32, #tpu.memory_space<vmem>>, vector<8x1xf32>
    %c0_2 = arith.constant 0 : index
    %c0_3 = arith.constant 0 : index
    %4 = vector.load %arg2[%c0_2, %c0_3] : memref<8x256xf32, #tpu.memory_space<vmem>>, vector<8x256xf32>
    %cst = arith.constant dense<0.000000e+00> : vector<8xf32>
    %5 = vector.multi_reduction <add>, %4, %cst [1] : vector<8x256xf32> to vector<8xf32>
    %6 = vector.shape_cast %5 : vector<8xf32> to vector<8x1xf32>
    %7 = arith.addf %3, %6 : vector<8x1xf32>
    %c0_4 = arith.constant 0 : index
    %c0_5 = arith.constant 0 : index
    %8 = vector.load %arg3[%c0_4, %c0_5] : memref<8x1xf32, #tpu.memory_space<vmem>>, vector<8x1xf32>
    tpu.vector_store %arg3[%c0_4, %c0_5], %7 {strides = array<i32>} : memref<8x1xf32, #tpu.memory_space<vmem>>, vector<8x1xf32>,
    return
  }
  func.func @transform_0(%arg0: i32, %arg1: i32) -> (i32, i32) {
    %c0_i32 = arith.constant 0 : i32
    return %arg0, %arg1 : i32, i32
  }
  func.func @transform_1(%arg0: i32, %arg1: i32) -> (i32, i32) {
    %c0_i32 = arith.constant 0 : i32
    %c0_i32_0 = arith.constant 0 : i32
    return %arg0, %c0_i32 : i32, i32
  }
}

</mosaic_0001>

<llo_original>
// kernel: tpu_custom_call.1
$region0: #{tpu_custom_call.1}
  #allocation0 [shape = 'u32[]', space=smem, size = 0x4, offset = 0x4, fixed_abs, tag = 'smem constant byte address 0x4 - core index']
  #allocation1 [shape = 'u32[72,128]{1,0:T(1,128)}', space=vmem, size = 0x9000, scoped, tag = 'internal scratch']
  %s0 = inlined_call_operand.hbm [shape: f32[8,256], index: 0, kind: input, shape index: {}]
  %s1 = inlined_call_operand.vmem [shape: f32[8,1], index: 1, kind: output, shape index: {}]
  %s2 = sld [smem:[#allocation0]]
  $region22: #{tpu_custom_call.1} parent=0
    _
  %s4 = ssub.s32 1, %s2
  %s5 = scalar_select 0, %s4, %s2
  $region1: #{tpu_custom_call.1} parent=0
    #allocation2 [shape = 'u8[8192]{0}', space=vmem, size = 0x2000, scoped, tag = 'input window, operand 0, single buffered']
    #allocation3 [shape = 's32[1]{0}', space=sflag, size = 0x4, scoped, tag = 'scoped memory for tpu_custom_call.1']
    %6 = vsyncpa [#allocation3], 0
    // Predicated region
    $region2: #{tpu_custom_call.1} parent=1 // pred_check
      _
    $region3: #{tpu_custom_call.1} parent=1 // pred_check_branch
      %8 = sbr.rel (0) target = $region5
    $region4: #{tpu_custom_call.1} parent=1 // pred_region
      %10 = vsyncadd [#allocation3], 0
      %s12 = sshll.u32 %s0, 4
      %s13 = int_to_ptr.hbm [resolvable:$true] %s12
      %s14 = sshll.u32 [#allocation2], 4
      %s15 = int_to_ptr.vmem [resolvable:$true] %s14
      %17 = dma.hbm_to_vmem [thread:$0]  %s13, 256, %s15, [#allocation3]
    $region5: #{tpu_custom_call.1} parent=1 // pred_fallthru
      _
    // Predicated region
    $region6: #{tpu_custom_call.1} parent=1 // pred_check
      _
    $region7: #{tpu_custom_call.1} parent=1 // pred_check_branch
      %19 = sbr.rel (0) target = $region9
    $region8: #{tpu_custom_call.1} parent=1 // pred_region
      %21 = dma.done [#allocation3], 256
    $region9: #{tpu_custom_call.1} parent=1 // pred_fallthru
      _
    %p22 = scmp.eq.s32.totalorder 0, 0
    // Predicated region
    $region10: #{tpu_custom_call.1} parent=1 // pred_check
      %p23 = pneg %p22
    $region11: #{tpu_custom_call.1} parent=1 // pred_check_branch
      %25 = sbr.rel (%p23) target = $region13
    $region12: #{tpu_custom_call.1} parent=1 // pred_region
      %vm26 = vcmask 7168
      %27 = vst.msk [vmem:[%s1] sm:$0xff] %vm26, 0.0
    $region13: #{tpu_custom_call.1} parent=1 // pred_fallthru
      _
    %v28 = vld [vmem:[%s1] sm:$0xff]
    %v29 = vld [vmem:[#allocation2] sm:$0xff]
    %v30 = vld [vmem:[#allocation2 + $0x8] sm:$0xff]
    %v31 = vadd.f32 %v29, %v30
    %32 = vadd.xlane.f32.xlu0 %v31
    %v33 = vpop.xlane.xlu0 %32
    %v34 = vadd.f32 %v28, %v33
    %vm35 = vcmask 7168
    %36 = vst.msk [vmem:[%s1] sm:$0xff] %vm35, %v34
    // Predicated region
    $region14: #{tpu_custom_call.1} parent=1 // pred_check
      _
    $region15: #{tpu_custom_call.1} parent=1 // pred_check_branch
      %38 = sbr.rel (0) target = $region17
    $region16: #{tpu_custom_call.1} parent=1 // pred_region
      _
    $region17: #{tpu_custom_call.1} parent=1 // pred_fallthru
      _
    // Predicated region
    $region18: #{tpu_custom_call.1} parent=1 // pred_check
      _
    $region19: #{tpu_custom_call.1} parent=1 // pred_check_branch
      %40 = sbr.rel (0) target = $region21
    $region20: #{tpu_custom_call.1} parent=1 // pred_region
      _
    $region21: #{tpu_custom_call.1} parent=1 // pred_fallthru
      _
    %41 = vsyncpa [#allocation3], 1

</llo_original>
